<compile_context>
chip_gen: v5e
topology: v5e:2x2
jax: 0.10.0
libtpu: 0.0.40
codegen_flags: <defaults>
</compile_context>

<pallas_src>
import functools

import jax
import jax.numpy as jnp
from jax.experimental import pallas as pl
from jax.experimental.pallas import tpu as pltpu

LANE = 128
SUBLANE = 8
ALIGN = SUBLANE * LANE            # kernel consumes a multiple of 1024 elements
BLOCK_BYTES_PER_INPUT = 4 << 20   # 4 MiB per input per pipeline buffer
VMEM_LIMIT_BYTES = 32 << 20       # 2 inputs x 2 buffers x 4 MiB + scratch fits


def _accumulate(pred_ref, gt_ref, acc_i_ref, acc_u_ref, valid_rows=None):
    """Add this block's contribution to the (8,128) f32 VPU accumulators."""
    p = pred_ref[...].astype(jnp.float32)
    g = gt_ref[...].astype(jnp.float32)
    prod = g * p
    ssum = g + p
    if valid_rows is not None:
        # Only the single ragged block pays for the iota + compare + selects.
        row_ids = jax.lax.broadcasted_iota(jnp.int32, prod.shape, 0)
        keep = row_ids < valid_rows          # valid_rows is a Python int
        prod = jnp.where(keep, prod, 0.0)
        ssum = jnp.where(keep, ssum, 0.0)
    # (tile_rows,128) -> (8,128): 8-row-group aligned reshape (layout
    # preserving) + a tree of vreg adds; stays on the VPU.
    acc_i_ref[...] += jnp.sum(prod.reshape(-1, SUBLANE, LANE), axis=0)
    acc_u_ref[...] += jnp.sum(ssum.reshape(-1, SUBLANE, LANE), axis=0)


def _dice_sums_kernel(pred_ref, gt_ref, out_ref, acc_i_ref, acc_u_ref, *,
                      full_blocks, ragged_rows):
    """Per-shard partial sums of (gt*pred) and (gt+pred).

    Grid is (shards, chunks). Global block index gb = s*chunks + c; blocks
    [0, full_blocks) are full, block full_blocks (if ragged_rows) is the
    ragged tail, anything beyond is a clamped duplicate and is skipped.
    Each shard writes its own (1,2) row of the SMEM output on its last chunk.
    """
    s = pl.program_id(0)
    c = pl.program_id(1)
    chunks = pl.num_programs(1)
    gb = s * chunks + c

    @pl.when(c == 0)
    def _init():
        acc_i_ref[...] = jnp.zeros_like(acc_i_ref)
        acc_u_ref[...] = jnp.zeros_like(acc_u_ref)

    @pl.when(gb < full_blocks)
    def _full():
        _accumulate(pred_ref, gt_ref, acc_i_ref, acc_u_ref)

    if ragged_rows:
        @pl.when(gb == full_blocks)
        def _ragged():
            _accumulate(pred_ref, gt_ref, acc_i_ref, acc_u_ref,
                        valid_rows=ragged_rows)

    @pl.when(c == chunks - 1)
    def _finish():
        out_ref[0, 0] = jnp.sum(acc_i_ref[...])   # intersect partial
        out_ref[0, 1] = jnp.sum(acc_u_ref[...])   # union partial


@jax.jit
def dice_loss(pred, gt):
    assert pred.shape == gt.shape, "pred and gt must have the same shape"

    p_flat = pred.reshape(-1)
    g_flat = gt.reshape(-1)
    n = p_flat.shape[0]

    rem = n % ALIGN            # static
    m = n - rem                # elements handled by the kernel

    tail_i = jnp.float32(0.0)
    tail_u = jnp.float32(0.0)
    if rem:
        # <=1023-element tail: tiny jnp reduction, avoids a full padded copy.
        pt = p_flat[m:].astype(jnp.float32)
        gtl = g_flat[m:].astype(jnp.float32)
        tail_i = jnp.sum(gtl * pt)
        tail_u = jnp.sum(gtl + pt)

    if m > 0:
        p_head = p_flat[:m] if rem else p_flat
        g_head = g_flat[:m] if rem else g_flat
        p2 = p_head.reshape(-1, LANE)   # free reshape (contiguous, multiple of 128)
        g2 = g_head.reshape(-1, LANE)
        rows_total = m // LANE          # multiple of SUBLANE by construction

        itemsize = max(p2.dtype.itemsize, g2.dtype.itemsize)
        big_rows = max(SUBLANE,
                       (BLOCK_BYTES_PER_INPUT // (LANE * itemsize))
                       // SUBLANE * SUBLANE)
        tile_rows = min(big_rows, rows_total)          # multiple of 8
        num_blocks = pl.cdiv(rows_total, tile_rows)
        full_blocks = rows_total // tile_rows
        ragged_rows = rows_total % tile_rows           # multiple of 8 (or 0)

        # Two shards -> split across the 2 TensorCores on v7x; serializes
        # harmlessly on single-TC chips (v5e/v6e).
        shards = 2 if num_blocks >= 2 else 1
        chunks = pl.cdiv(num_blocks, shards)

        if shards * chunks == num_blocks:
            def in_map(s, c):
                return (s * chunks + c, 0)
        else:
            # Odd block count: clamp the one overhanging chunk; its
            # accumulation is skipped inside the kernel (gb >= num_blocks).
            def in_map(s, c):
                return (jnp.minimum(s * chunks + c, num_blocks - 1), 0)

        kernel = functools.partial(_dice_sums_kernel,
                                   full_blocks=full_blocks,
                                   ragged_rows=ragged_rows)

        cost = pl.CostEstimate(
            flops=3 * m,
            transcendentals=0,
            bytes_accessed=m * (p2.dtype.itemsize + g2.dtype.itemsize)
            + shards * 2 * 4)

        sums = pl.pallas_call(
            kernel,
            out_shape=jax.ShapeDtypeStruct((shards, 2), jnp.float32),
            grid_spec=pltpu.PrefetchScalarGridSpec(
                num_scalar_prefetch=0,
                grid=(shards, chunks),
                in_specs=[
                    pl.BlockSpec((tile_rows, LANE), in_map),
                    pl.BlockSpec((tile_rows, LANE), in_map),
                ],
                out_specs=pl.BlockSpec((1, 2), lambda s, c: (s, 0),
                                       memory_space=pltpu.SMEM),
                scratch_shapes=[
                    pltpu.VMEM((SUBLANE, LANE), jnp.float32),
                    pltpu.VMEM((SUBLANE, LANE), jnp.float32),
                ],
            ),
            compiler_params=pltpu.CompilerParams(
                dimension_semantics=("parallel", "arbitrary"),
                vmem_limit_bytes=VMEM_LIMIT_BYTES),
            cost_estimate=cost,
        )(p2, g2)

        kern_i = jnp.sum(sums[:, 0])
        kern_u = jnp.sum(sums[:, 1])
    else:
        kern_i = jnp.float32(0.0)
        kern_u = jnp.float32(0.0)

    intersect = kern_i + tail_i + jnp.float32(1e-8)
    union = kern_u + tail_u + jnp.float32(1e-8)
    return 1.0 - 2.0 * intersect / union


if __name__ == "__main__":
    key = jax.random.PRNGKey(0)
    k_pred, k_gt = jax.random.split(key)

    # Small NCHW-style shapes consistent with a segmentation prediction / mask.
    pred = jax.nn.sigmoid(jax.random.normal(k_pred, (2, 4, 16, 16), jnp.float32))
    gt = (jax.random.uniform(k_gt, (2, 4, 16, 16)) > 0.5).astype(jnp.float32)

    loss = dice_loss(pred, gt)
    jax.block_until_ready(loss)

    # Pure-JAX reference check.
    inter_ref = jnp.sum(gt * pred) + 1e-8
    union_ref = jnp.sum(gt + pred) + 1e-8
    ref = 1.0 - 2.0 * inter_ref / union_ref
    assert jnp.allclose(loss, ref, rtol=1e-5, atol=1e-6), (loss, ref)

    print("KERNEL_OK")
</pallas_src>

<mosaic_0001>
module attributes {stable_mosaic.version = 11 : i64} {
  func.func @_dice_sums_kernel(%arg0: i32, %arg1: i32, %arg2: memref<16x128xf32, #tpu.memory_space<vmem>>, %arg3: memref<16x128xf32, #tpu.memory_space<vmem>>, %arg4: memref<1x2xf32, #tpu.memory_space<smem>>, %arg5: memref<8x128xf32, #tpu.memory_space<vmem>>, %arg6: memref<8x128xf32, #tpu.memory_space<vmem>>) attributes {dimension_semantics = [#tpu.dimension_semantics<parallel>, #tpu.dimension_semantics<arbitrary>], iteration_bounds = array<i64: 1, 1>, scalar_prefetch = 0 : i64, scratch_operands = 2 : i64, tpu.core_type = #tpu.core_type<tc>, window_params = [{transform_indices = @transform_0, window_bounds = array<i64: 16, 128>}, {transform_indices = @transform_1, window_bounds = array<i64: 16, 128>}, {transform_indices = @transform_2, window_bounds = array<i64: 1, 2>}]} {
    %c1_i32 = arith.constant 1 : i32
    %0 = arith.muli %arg0, %c1_i32 : i32
    %1 = arith.addi %0, %arg1 : i32
    %c0_i32 = arith.constant 0 : i32
    %2 = arith.cmpi eq, %arg1, %c0_i32 : i32
    %3 = arith.extui %2 : i1 to i32
    %c0_i32_0 = arith.constant 0 : i32
    %4 = arith.cmpi ne, %3, %c0_i32_0 : i32
    scf.if %4 {
      %cst = arith.constant 0.000000e+00 : f32
      %11 = vector.broadcast %cst : f32 to vector<8x128xf32>
      %c0 = arith.constant 0 : index
      %c0_5 = arith.constant 0 : index
      %12 = vector.load %arg5[%c0, %c0_5] : memref<8x128xf32, #tpu.memory_space<vmem>>, vector<8x128xf32>
      tpu.vector_store %arg5[%c0, %c0_5], %11 {strides = array<i32>} : memref<8x128xf32, #tpu.memory_space<vmem>>, vector<8x128xf32>,
      %cst_6 = arith.constant 0.000000e+00 : f32
      %13 = vector.broadcast %cst_6 : f32 to vector<8x128xf32>
      %c0_7 = arith.constant 0 : index
      %c0_8 = arith.constant 0 : index
      %14 = vector.load %arg6[%c0_7, %c0_8] : memref<8x128xf32, #tpu.memory_space<vmem>>, vector<8x128xf32>
      tpu.vector_store %arg6[%c0_7, %c0_8], %13 {strides = array<i32>} : memref<8x128xf32, #tpu.memory_space<vmem>>, vector<8x128xf32>,
    } else {
    }
    %c1_i32_1 = arith.constant 1 : i32
    %5 = arith.cmpi slt, %1, %c1_i32_1 : i32
    %6 = arith.extui %5 : i1 to i32
    %c0_i32_2 = arith.constant 0 : i32
    %7 = arith.cmpi ne, %6, %c0_i32_2 : i32
    scf.if %7 {
      %c0 = arith.constant 0 : index
      %c0_5 = arith.constant 0 : index
      %11 = vector.load %arg2[%c0, %c0_5] : memref<16x128xf32, #tpu.memory_space<vmem>>, vector<16x128xf32>
      %c0_6 = arith.constant 0 : index
      %c0_7 = arith.constant 0 : index
      %12 = vector.load %arg3[%c0_6, %c0_7] : memref<16x128xf32, #tpu.memory_space<vmem>>, vector<16x128xf32>
      %13 = arith.mulf %12, %11 : vector<16x128xf32>
      %14 = arith.addf %12, %11 : vector<16x128xf32>
      %c0_8 = arith.constant 0 : index
      %c0_9 = arith.constant 0 : index
      %15 = vector.load %arg5[%c0_8, %c0_9] : memref<8x128xf32, #tpu.memory_space<vmem>>, vector<8x128xf32>
      %16 = vector.shape_cast %13 : vector<16x128xf32> to vector<2x8x128xf32>
      %cst = arith.constant dense<0.000000e+00> : vector<8x128xf32>
      %17 = vector.multi_reduction <add>, %16, %cst [0] : vector<2x8x128xf32> to vector<8x128xf32>
      %18 = arith.addf %15, %17 : vector<8x128xf32>
      %c0_10 = arith.constant 0 : index
      %c0_11 = arith.constant 0 : index
      %19 = vector.load %arg5[%c0_10, %c0_11] : memref<8x128xf32, #tpu.memory_space<vmem>>, vector<8x128xf32>
      tpu.vector_store %arg5[%c0_10, %c0_11], %18 {strides = array<i32>} : memref<8x128xf32, #tpu.memory_space<vmem>>, vector<8x128xf32>,
      %c0_12 = arith.constant 0 : index
      %c0_13 = arith.constant 0 : index
      %20 = vector.load %arg6[%c0_12, %c0_13] : memref<8x128xf32, #tpu.memory_space<vmem>>, vector<8x128xf32>
      %21 = vector.shape_cast %14 : vector<16x128xf32> to vector<2x8x128xf32>
      %cst_14 = arith.constant dense<0.000000e+00> : vector<8x128xf32>
      %22 = vector.multi_reduction <add>, %21, %cst_14 [0] : vector<2x8x128xf32> to vector<8x128xf32>
      %23 = arith.addf %20, %22 : vector<8x128xf32>
      %c0_15 = arith.constant 0 : index
      %c0_16 = arith.constant 0 : index
      %24 = vector.load %arg6[%c0_15, %c0_16] : memref<8x128xf32, #tpu.memory_space<vmem>>, vector<8x128xf32>
      tpu.vector_store %arg6[%c0_15, %c0_16], %23 {strides = array<i32>} : memref<8x128xf32, #tpu.memory_space<vmem>>, vector<8x128xf32>,
    } else {
    }
    %c0_i32_3 = arith.constant 0 : i32
    %8 = arith.cmpi eq, %arg1, %c0_i32_3 : i32
    %9 = arith.extui %8 : i1 to i32
    %c0_i32_4 = arith.constant 0 : i32
    %10 = arith.cmpi ne, %9, %c0_i32_4 : i32
    scf.if %10 {
      %c0 = arith.constant 0 : index
      %c0_5 = arith.constant 0 : index
      %11 = vector.load %arg5[%c0, %c0_5] : memref<8x128xf32, #tpu.memory_space<vmem>>, vector<8x128xf32>
      %12 = vector.shape_cast %11 : vector<8x128xf32> to vector<1x8x128xf32>
      %cst = arith.constant dense<0.000000e+00> : vector<1xf32>
      %13 = vector.multi_reduction <add>, %12, %cst [1, 2] : vector<1x8x128xf32> to vector<1xf32>
      %14 = vector.shape_cast %13 : vector<1xf32> to vector<1x1x1xf32>
      %15 = vector.extract %14[0, 0, 0] : f32 from vector<1x1x1xf32>
      %c0_6 = arith.constant 0 : index
      %c0_7 = arith.constant 0 : index
      %16 = memref.load %arg4[%c0_6, %c0_7] : memref<1x2xf32, #tpu.memory_space<smem>>
      memref.store %15, %arg4[%c0_6, %c0_7] : memref<1x2xf32, #tpu.memory_space<smem>>
      %c0_8 = arith.constant 0 : index
      %c0_9 = arith.constant 0 : index
      %17 = vector.load %arg6[%c0_8, %c0_9] : memref<8x128xf32, #tpu.memory_space<vmem>>, vector<8x128xf32>
      %18 = vector.shape_cast %17 : vector<8x128xf32> to vector<1x8x128xf32>
      %cst_10 = arith.constant dense<0.000000e+00> : vector<1xf32>
      %19 = vector.multi_reduction <add>, %18, %cst_10 [1, 2] : vector<1x8x128xf32> to vector<1xf32>
      %20 = vector.shape_cast %19 : vector<1xf32> to vector<1x1x1xf32>
      %21 = vector.extract %20[0, 0, 0] : f32 from vector<1x1x1xf32>
      %c0_11 = arith.constant 0 : index
      %c1 = arith.constant 1 : index
      %22 = memref.load %arg4[%c0_11, %c1] : memref<1x2xf32, #tpu.memory_space<smem>>
      memref.store %21, %arg4[%c0_11, %c1] : memref<1x2xf32, #tpu.memory_space<smem>>
    } else {
    }
    return
  }
  func.func @transform_0(%arg0: i32, %arg1: i32) -> (i32, i32) {
    %c1_i32 = arith.constant 1 : i32
    %0 = arith.muli %arg0, %c1_i32 : i32
    %1 = arith.addi %0, %arg1 : i32
    %c0_i32 = arith.constant 0 : i32
    %c0_i32_0 = arith.constant 0 : i32
    return %1, %c0_i32 : i32, i32
  }
  func.func @transform_1(%arg0: i32, %arg1: i32) -> (i32, i32) {
    %c1_i32 = arith.constant 1 : i32
    %0 = arith.muli %arg0, %c1_i32 : i32
    %1 = arith.addi %0, %arg1 : i32
    %c0_i32 = arith.constant 0 : i32
    %c0_i32_0 = arith.constant 0 : i32
    return %1, %c0_i32 : i32, i32
  }
  func.func @transform_2(%arg0: i32, %arg1: i32) -> (i32, i32) {
    %c0_i32 = arith.constant 0 : i32
    %c0_i32_0 = arith.constant 0 : i32
    return %arg0, %c0_i32 : i32, i32
  }
}

</mosaic_0001>

<llo_original>
// kernel: dice_loss.1
$region0: #{dice_loss.1}
  #allocation0 [shape = 'u32[]', space=smem, size = 0x4, offset = 0x4, fixed_abs, tag = 'smem constant byte address 0x4 - core index']
  #allocation1 [shape = 'u32[72,128]{1,0:T(1,128)}', space=vmem, size = 0x9000, scoped, tag = 'internal scratch']
  #allocation2 [shape = 'f32[8,128]{1,0:T(8,128)}', space=vmem, size = 0x1000, scoped, tag = 'scratch operand']
  #allocation3 [shape = 'f32[8,128]{1,0:T(8,128)}', space=vmem, size = 0x1000, scoped, tag = 'scratch operand']
  %s0 = inlined_call_operand.vmem [shape: f32[16,128], index: 0, kind: input, shape index: {}]
  %s1 = inlined_call_operand.vmem [shape: f32[16,128], index: 1, kind: input, shape index: {}]
  %s2 = inlined_call_operand.vmem [shape: f32[1,2], index: 2, kind: output, shape index: {}]
  %s3 = sld [smem:[#allocation0]]
  $region30: #{dice_loss.1} parent=0
    _
  %s5 = ssub.s32 1, %s3
  %s6 = scalar_select 0, %s5, %s3
  $region1: #{dice_loss.1} parent=0
    #allocation4 [shape = 'u8[512]{0}', space=smem, size = 0x200, scoped, tag = 'output window, operand 0, single buffered']
    #allocation5 [shape = 's32[1]{0}', space=sflag, size = 0x4, scoped, tag = 'scoped memory for dice_loss.1']
    %7 = vsyncpa [#allocation5], 0
    // Predicated region
    $region2: #{dice_loss.1} parent=1 // pred_check
      _
    $region3: #{dice_loss.1} parent=1 // pred_check_branch
      %9 = sbr.rel (0) target = $region5
    $region4: #{dice_loss.1} parent=1 // pred_region
      %s10 = sadd.s32 0, 0
      %s11 = smul.u32 2, %s10
      %p12 = scmp.lt.s32.totalorder %s11, 1
      %s13 = scalar_select %p12, %s11, 1
      %s14 = smul.addr %s13, 8
      %s15 = scalar_lea.vmem %s0, %s14
      %s16 = sadd.s32 0, 0
      %s17 = smul.u32 2, %s16
    $region5: #{dice_loss.1} parent=1 // pred_fallthru
      _
    // Predicated region
    $region6: #{dice_loss.1} parent=1 // pred_check
      _
    $region7: #{dice_loss.1} parent=1 // pred_check_branch
      %19 = sbr.rel (0) target = $region9
    $region8: #{dice_loss.1} parent=1 // pred_region
      %s20 = sadd.s32 0, 0
      %s21 = smul.u32 2, %s20
      %p22 = scmp.lt.s32.totalorder %s21, 1
      %s23 = scalar_select %p22, %s21, 1
      %s24 = smul.addr %s23, 8
      %s25 = scalar_lea.vmem %s1, %s24
      %s26 = sadd.s32 0, 0
      %s27 = smul.u32 2, %s26
    $region9: #{dice_loss.1} parent=1 // pred_fallthru
      _
    %s28 = sadd.s32 0, 0
    %s29 = smul.u32 2, %s28
    %p30 = scmp.lt.s32.totalorder %s29, 1
    %s31 = scalar_select %p30, %s29, 1
    %s32 = smul.addr %s31, 8
    %s33 = scalar_lea.vmem %s0, %s32
    %s34 = sadd.s32 0, 0
    %s35 = smul.u32 2, %s34
    %p36 = scmp.lt.s32.totalorder %s35, 1
    %s37 = scalar_select %p36, %s35, 1
    %s38 = smul.addr %s37, 8
    %s39 = scalar_lea.vmem %s1, %s38
    %s40 = sadd.s32 0, 0
    %s41 = smul.u32 2, %s40
    %p42 = scmp.lt.s32.totalorder %s41, 1
    %s43 = scalar_select %p42, %s41, 1
    %s44 = smul.addr %s43, 8
    %s45 = scalar_lea.vmem %s0, %s44
    %s46 = sadd.s32 0, 0
    %s47 = smul.u32 2, %s46
    %s48 = sadd.s32 0, 0
    %s49 = smul.u32 2, %s48
    %p50 = scmp.lt.s32.totalorder %s49, 1
    %s51 = scalar_select %p50, %s49, 1
    %s52 = smul.addr %s51, 8
    %s53 = scalar_lea.vmem %s1, %s52
    %s54 = sadd.s32 0, 0
    %s55 = smul.u32 2, %s54
    %s56 = sadd.s32 0, 0
    %p57 = scmp.eq.s32.totalorder 0, 0
    // Predicated region
    $region10: #{dice_loss.1} parent=1 // pred_check
      %p58 = pneg %p57
    $region11: #{dice_loss.1} parent=1 // pred_check_branch
      %60 = sbr.rel (%p58) target = $region13
    $region12: #{dice_loss.1} parent=1 // pred_region
      %61 = vst [vmem:[#allocation2] sm:$0xff] 0.0
      %62 = vst [vmem:[#allocation3] sm:$0xff] 0.0
    $region13: #{dice_loss.1} parent=1 // pred_fallthru
      _
    %p63 = scmp.lt.s32.totalorder %s56, 1
    // Predicated region
    $region14: #{dice_loss.1} parent=1 // pred_check
      %p64 = pneg %p63
    $region15: #{dice_loss.1} parent=1 // pred_check_branch
      %66 = sbr.rel (%p64) target = $region17
    $region16: #{dice_loss.1} parent=1 // pred_region
      %v67 = vld [vmem:[%s45] sm:$0xff]
      %v68 = vld [vmem:[%s45 + $0x8] sm:$0xff]
      %v69 = vld [vmem:[%s53] sm:$0xff]
      %v70 = vld [vmem:[%s53 + $0x8] sm:$0xff]
      %v71 = vmul.f32 %v69, %v67
      %v72 = vmul.f32 %v70, %v68
      %v73 = vadd.f32 %v69, %v67
      %v74 = vadd.f32 %v70, %v68
      %v75 = vld [vmem:[#allocation2] sm:$0xff]
      %v76 = vadd.f32 %v71, %v72
      %v77 = vadd.f32 %v75, %v76
      %78 = vst [vmem:[#allocation2] sm:$0xff] %v77
      %v79 = vld [vmem:[#allocation3] sm:$0xff]
      %v80 = vadd.f32 %v73, %v74
      %v81 = vadd.f32 %v79, %v80
      %82 = vst [vmem:[#allocation3] sm:$0xff] %v81
    $region17: #{dice_loss.1} parent=1 // pred_fallthru
      _
    // Predicated region
    $region18: #{dice_loss.1} parent=1 // pred_check
      %p83 = pneg %p57
    $region19: #{dice_loss.1} parent=1 // pred_check_branch
      %85 = sbr.rel (%p83) target = $region21
    $region20: #{dice_loss.1} parent=1 // pred_region
      %v86 = vld [vmem:[#allocation2] sm:$0xff]
      %87 = vadd.xlane.f32.xlu0 %v86
      %v88 = vpop.xlane.xlu0 %87
      %v89 = vrot.slane %v88, 4
      %v90 = vadd.f32 %v88, %v89
      %v91 = vrot.slane %v90, 2
      %v92 = vadd.f32 %v90, %v91
      %v93 = vrot.slane %v92, 1
      %v94 = vadd.f32 %v92, %v93
      %s95 = vtos %v94
      %s96 = scalar_lea.smem [#allocation4], 0
      %97 = sst [smem:[%s96]] %s95
      %v98 = vld [vmem:[#allocation3] sm:$0xff]
      %99 = vadd.xlane.f32.xlu0 %v98
      %v100 = vpop.xlane.xlu0 %99
      %v101 = vrot.slane %v100, 4
      %v102 = vadd.f32 %v100, %v101
      %v103 = vrot.slane %v102, 2
      %v104 = vadd.f32 %v102, %v103
      %v105 = vrot.slane %v104, 1
      %v106 = vadd.f32 %v104, %v105
      %s107 = vtos %v106
      %s108 = scalar_lea.smem [#allocation4], 1
      %109 = sst [smem:[%s108]] %s107
    $region21: #{dice_loss.1} parent=1 // pred_fallthru
      _
    // Predicated region
    $region22: #{dice_loss.1} parent=1 // pred_check
      _
    $region23: #{dice_loss.1} parent=1 // pred_check_branch
      %111 = sbr.rel (0) target = $region25
    $region24: #{dice_loss.1} parent=1 // pred_region
      %113 = vsyncadd [#allocation5], 0
      %s115 = sshll.u32 %s2, 4
      %s116 = int_to_ptr.vmem [resolvable:$true] %s115
      %118 = dma.smem_to_vmem [#allocation4], 16, %s116, [#allocation5]
    $region25: #{dice_loss.1} parent=1 // pred_fallthru
      _
    // Predicated region
    $region26: #{dice_loss.1} parent=1 // pred_check
      _
    $region27: #{dice_loss.1} parent=1 // pred_check_branch
      %120 = sbr.rel (0) target = $region29
    $region28: #{dice_loss.1} parent=1 // pred_region
      %122 = dma.done [#allocation5], 16
    $region29: #{dice_loss.1} parent=1 // pred_fallthru
      _
    %123 = sfence
    %124 = vsyncpa [#allocation5], 1

</llo_original>
